<compile_context>
chip_gen: v7x
topology: tpu7x:2x2x1
jax: 0.10.0
libtpu: 0.0.40
codegen_flags: <defaults>
</compile_context>

<pallas_src>
import functools

import jax
import jax.numpy as jnp
import numpy as np
from jax.experimental import pallas as pl
from jax.experimental.pallas import tpu as pltpu

EPS = 1e-5  # PyTorch GroupNorm default eps


def _pick_block_batch(B: int, C: int, L: int, *, max_tb: int = 8,
                      per_step_budget: int = 12 << 20) -> int:
    """Samples per grid step: amortize per-step overhead, stay inside VMEM,
    and prefer >=4 grid steps so each v7x TensorCore keeps a pipelined loop."""
    plane = 4 * C * L  # one f32 (C, L) sample plane
    # ~ double-buffered in+out blocks + ~6 live full-size f32 temporaries
    fits = lambda tb: (2 * 2 + 6) * tb * plane <= per_step_budget
    cands = [tb for tb in range(1, min(B, max_tb) + 1) if B % tb == 0 and fits(tb)]
    if not cands:
        return 1
    for min_steps in (4, 2, 1):
        ok = [tb for tb in cands if B // tb >= min_steps]
        if ok:
            return max(ok)
    return 1


def _basic_block_kernel(
    x_ref,                 # (TB, C, L)   input block
    w1_ref,                # (P, 3*C)     conv1 weights, 3 taps packed along K
    w2_ref,                # (P, 3*P)     conv2 weights, 3 taps packed along K
    g1_ref, b1_ref,        # (P, 1)       gn1 gamma / beta (f32)
    g2_ref, b2_ref,        # (P, 1)       gn2 gamma / beta (f32)
    o_ref,                 # (TB, P, L)   output block
    *, num_groups: int, group_size: int, matmul_dtype,
):
    TB, C, L = x_ref.shape
    P = o_ref.shape[1]
    N = TB * L                              # all TB samples packed along lanes

    # Conv boundary masks (hoisted): realize conv1d's zero padding at each
    # per-sample edge (and kill circular / cross-sample wraparound).
    lane = jax.lax.broadcasted_iota(jnp.int32, (1, N), 1)
    pos = lane % L                           # position within a sample
    m1_mask = pos >= 1                       # h[l-1] exists within the sample
    p1_mask = pos <= L - 2                   # h[l+1] exists within the sample
    zero = jnp.zeros((), matmul_dtype)

    w1 = w1_ref[...]
    w2 = w2_ref[...]
    g1 = g1_ref[...]; b1 = b1_ref[...]
    g2 = g2_ref[...]; b2 = b2_ref[...]

    def conv3(h_f32, w):
        # conv1d(k=3, pad=1, stride=1, no bias) for ALL TB samples as ONE MXU
        # matmul: out = W_cat @ [h[l-1]; h[l]; h[l+1]],  K = 3*Cin, N = TB*L.
        # Shifts go through the XLU (pltpu.roll, non-negative shifts only);
        # sample boundaries and wraparound lanes are zeroed by the masks.
        hm = h_f32.astype(matmul_dtype)
        h_m1 = jnp.where(m1_mask, pltpu.roll(hm, shift=1, axis=1), zero)
        h_p1 = jnp.where(p1_mask, pltpu.roll(hm, shift=N - 1, axis=1), zero)
        hcat = jnp.concatenate([h_m1, hm, h_p1], axis=0)         # (3*Cin, N)
        return jnp.dot(w, hcat, preferred_element_type=jnp.float32)

    def group_norm(y, gamma, beta):
        # y: (P, N) f32.  Per-sample, per-group statistics via lane sum /
        # sum-of-squares reductions, then one fused scale/bias application.
        y3 = y.reshape(P, TB, L)
        s = jnp.sum(y3, axis=2)                                  # (P, TB)
        ss = jnp.sum(y3 * y3, axis=2)                            # (P, TB)
        gsum = jnp.sum(s.reshape(num_groups, group_size, TB), axis=1)   # (G, TB)
        gssq = jnp.sum(ss.reshape(num_groups, group_size, TB), axis=1)  # (G, TB)
        cnt = float(group_size * L)
        mean = gsum / cnt
        var = jnp.maximum(gssq / cnt - mean * mean, 0.0)
        inv = jax.lax.rsqrt(var + EPS)                           # (G, TB)
        rep = lambda v: jnp.broadcast_to(
            v[:, None, :], (num_groups, group_size, TB)).reshape(P, TB)
        scale = gamma * rep(inv)                                 # (P, TB)
        bias = beta - rep(mean) * scale                          # (P, TB)
        return (y3 * scale[:, :, None] + bias[:, :, None]).reshape(P, N)

    # Pack the TB samples along the lane axis: (TB, C, L) -> (C, TB*L).
    x_blk = x_ref[...].astype(jnp.float32)
    h0 = jnp.swapaxes(x_blk, 0, 1).reshape(C, N)

    h = conv3(h0, w1)                               # conv1
    h = jnp.maximum(group_norm(h, g1, b1), 0.0)     # gn1 + relu
    h = conv3(h, w2)                                # conv2
    h = group_norm(h, g2, b2)                       # gn2
    h = jnp.maximum(h + h0, 0.0)                    # +residual (stride=1), relu
    o_ref[...] = jnp.swapaxes(h.reshape(P, TB, L), 0, 1).astype(o_ref.dtype)


def basic_block_1d(x, w1, w2, g1, b1, g2, b2, *, matmul_dtype=jnp.bfloat16):
    """x: (B, C, L); w1: (P, C, 3); w2: (P, P, 3); g*/b*: (P,).

    matmul_dtype: dtype of the MXU operands (bf16 by default for v5e/v6e/v7x;
    accumulation, GroupNorm, residual and HBM I/O stay in x's dtype / f32).
    """
    B, C, L = x.shape
    P = w1.shape[0]
    assert w1.shape == (P, C, 3) and w2.shape == (P, P, 3)
    assert C == P, "downsample=None requires inplanes == planes"
    G = min(32, P)
    assert P % G == 0
    gs = P // G

    f32 = jnp.float32
    # Pack the 3 taps along the contraction dim: (P, Cin, 3) -> (P, 3*Cin),
    # tap order [k=0 | k=1 | k=2] matching the [h[l-1]; h[l]; h[l+1]] stack.
    pack = lambda w: jnp.concatenate([w[:, :, k] for k in range(3)],
                                     axis=1).astype(matmul_dtype)
    w1cat, w2cat = pack(w1), pack(w2)
    aff = lambda v: v.astype(f32).reshape(P, 1)
    g1c, b1c, g2c, b2c = map(aff, (g1, b1, g2, b2))

    TB = _pick_block_batch(B, C, L)
    grid = (B // TB,)

    mxu_item = jnp.dtype(matmul_dtype).itemsize
    plane = 4 * C * L
    est = (2 * 2 + 6) * TB * plane + 2 * (w1cat.size + w2cat.size) * mxu_item
    vmem_limit = int(min(max(2 * est, 32 << 20), 48 << 20))

    flops = 2 * B * L * (3 * C * P + 3 * P * P)            # the two convs
    bytes_accessed = 4 * B * L * (C + P) + (w1cat.size + w2cat.size) * mxu_item
    cost = pl.CostEstimate(flops=flops, transcendentals=2 * B * G,
                           bytes_accessed=int(bytes_accessed))

    # Weights / affine params use constant index_maps: fetched once, not
    # re-DMA'd per grid step.
    const = lambda a: pl.BlockSpec(a.shape, lambda i: (0,) * a.ndim)

    kernel = functools.partial(
        _basic_block_kernel,
        num_groups=G, group_size=gs, matmul_dtype=matmul_dtype)

    return pl.pallas_call(
        kernel,
        out_shape=jax.ShapeDtypeStruct((B, P, L), x.dtype),
        grid_spec=pltpu.PrefetchScalarGridSpec(
            num_scalar_prefetch=0,
            grid=grid,
            in_specs=[
                pl.BlockSpec((TB, C, L), lambda i: (i, 0, 0)),   # x (full-dim block)
                const(w1cat), const(w2cat),                      # packed conv weights
                const(g1c), const(b1c),                          # gn1
                const(g2c), const(b2c),                          # gn2
            ],
            out_specs=pl.BlockSpec((TB, P, L), lambda i: (i, 0, 0)),
        ),
        compiler_params=pltpu.CompilerParams(
            dimension_semantics=("parallel",),
            vmem_limit_bytes=vmem_limit),
        cost_estimate=cost,
    )(x, w1cat, w2cat, g1c, b1c, g2c, b2c)


def _reference(x, w1, w2, g1, b1, g2, b2):
    """Pure-JAX reference mirroring the PyTorch forward."""
    P = w1.shape[0]
    G = min(32, P)

    def conv(inp, w):
        return jax.lax.conv_general_dilated(
            inp, w, window_strides=(1,), padding=((1, 1),),
            dimension_numbers=("NCH", "OIH", "NCH"))

    def gn(y, gamma, beta):
        B, C, L = y.shape
        yg = y.reshape(B, G, (C // G) * L)
        mean = yg.mean(-1, keepdims=True)
        var = ((yg - mean) ** 2).mean(-1, keepdims=True)
        yn = ((yg - mean) / jnp.sqrt(var + EPS)).reshape(B, C, L)
        return yn * gamma.reshape(1, C, 1) + beta.reshape(1, C, 1)

    out = conv(x, w1)
    out = jnp.maximum(gn(out, g1, b1), 0.0)
    out = conv(out, w2)
    out = gn(out, g2, b2)
    return jnp.maximum(out + x, 0.0)


if __name__ == "__main__":
    # Small shapes consistent with BasicBlock1D(inplanes=4, planes=4, stride=1)
    B, C, L = 2, 4, 16
    P = C  # planes == inplanes (no downsample)

    key = jax.random.PRNGKey(0)
    kx, kw1, kw2, kg1, kb1, kg2, kb2 = jax.random.split(key, 7)

    x = jax.random.normal(kx, (B, C, L), dtype=jnp.float32)
    # Conv1d(kernel_size=3, bias=False) weights; GroupNorm affine params.
    w1 = 0.2 * jax.random.normal(kw1, (P, C, 3), dtype=jnp.float32)
    w2 = 0.2 * jax.random.normal(kw2, (P, P, 3), dtype=jnp.float32)
    g1 = 1.0 + 0.1 * jax.random.normal(kg1, (P,), dtype=jnp.float32)
    b1 = 0.1 * jax.random.normal(kb1, (P,), dtype=jnp.float32)
    g2 = 1.0 + 0.1 * jax.random.normal(kg2, (P,), dtype=jnp.float32)
    b2 = 0.1 * jax.random.normal(kb2, (P,), dtype=jnp.float32)

    ref = _reference(x, w1, w2, g1, b1, g2, b2)

    # f32 MXU-operand path: tight tolerance.
    out_f32 = jax.block_until_ready(
        basic_block_1d(x, w1, w2, g1, b1, g2, b2, matmul_dtype=jnp.float32))
    np.testing.assert_allclose(np.asarray(out_f32), np.asarray(ref),
                               rtol=1e-4, atol=1e-4)

    # Default path: bf16 MXU operands (f32 accumulate/GN/residual), looser tol.
    out = jax.block_until_ready(basic_block_1d(x, w1, w2, g1, b1, g2, b2))
    np.testing.assert_allclose(np.asarray(out), np.asarray(ref),
                               rtol=5e-2, atol=5e-2)

    print("KERNEL_OK")
</pallas_src>

<mosaic_0001>
module attributes {stable_mosaic.version = 11 : i64} {
  func.func @_basic_block_kernel(%arg0: i32, %arg1: memref<1x4x16xf32, #tpu.memory_space<vmem>>, %arg2: memref<4x12xf32, #tpu.memory_space<vmem>>, %arg3: memref<4x12xf32, #tpu.memory_space<vmem>>, %arg4: memref<4x1xf32, #tpu.memory_space<vmem>>, %arg5: memref<4x1xf32, #tpu.memory_space<vmem>>, %arg6: memref<4x1xf32, #tpu.memory_space<vmem>>, %arg7: memref<4x1xf32, #tpu.memory_space<vmem>>, %arg8: memref<1x4x16xf32, #tpu.memory_space<vmem>>) attributes {dimension_semantics = [#tpu.dimension_semantics<parallel>], iteration_bounds = array<i64: 2>, scalar_prefetch = 0 : i64, scratch_operands = 0 : i64, tpu.core_type = #tpu.core_type<tc>, window_params = [{transform_indices = @transform_0, window_bounds = array<i64: 1, 4, 16>}, {pipeline_mode = #tpu.pipeline_mode<synchronous>, transform_indices = @transform_1, window_bounds = array<i64: 4, 12>}, {pipeline_mode = #tpu.pipeline_mode<synchronous>, transform_indices = @transform_2, window_bounds = array<i64: 4, 12>}, {pipeline_mode = #tpu.pipeline_mode<synchronous>, transform_indices = @transform_3, window_bounds = array<i64: 4, 1>}, {pipeline_mode = #tpu.pipeline_mode<synchronous>, transform_indices = @transform_4, window_bounds = array<i64: 4, 1>}, {pipeline_mode = #tpu.pipeline_mode<synchronous>, transform_indices = @transform_5, window_bounds = array<i64: 4, 1>}, {pipeline_mode = #tpu.pipeline_mode<synchronous>, transform_indices = @transform_6, window_bounds = array<i64: 4, 1>}, {transform_indices = @transform_7, window_bounds = array<i64: 1, 4, 16>}]} {
    %0 = tpu.iota {dimensions = array<i32: 1>} : vector<1x16xi32>
    %c16_i32 = arith.constant 16 : i32
    %c0_i32 = arith.constant 0 : i32
    %1 = arith.cmpi eq, %c16_i32, %c0_i32 : i32
    %c1_i32 = arith.constant 1 : i32
    %2 = arith.select %1, %c1_i32, %c16_i32 : i32
    %3 = vector.broadcast %2 : i32 to vector<1x16xi32>
    %4 = arith.remsi %0, %3 : vector<1x16xi32>
    %c0_i32_0 = arith.constant 0 : i32
    %5 = vector.broadcast %c0_i32_0 : i32 to vector<1x16xi32>
    %6 = arith.cmpi ne, %4, %5 : vector<1x16xi32>
    %c0_i32_1 = arith.constant 0 : i32
    %7 = vector.broadcast %c0_i32_1 : i32 to vector<1x16xi32>
    %8 = arith.cmpi slt, %4, %7 : vector<1x16xi32>
    %c0_i32_2 = arith.constant 0 : i32
    %9 = arith.cmpi slt, %2, %c0_i32_2 : i32
    %10 = vector.broadcast %9 : i1 to vector<1x16xi1>
    %11 = vector.broadcast %10 : vector<1x16xi1> to vector<1x16xi1>
    %12 = arith.xori %8, %11 : vector<1x16xi1>
    %13 = arith.andi %12, %6 : vector<1x16xi1>
    %14 = vector.broadcast %2 : i32 to vector<1x16xi32>
    %15 = arith.addi %4, %14 : vector<1x16xi32>
    %16 = arith.select %13, %15, %4 : vector<1x16xi1>, vector<1x16xi32>
    %c1_i32_3 = arith.constant 1 : i32
    %17 = vector.broadcast %c1_i32_3 : i32 to vector<1x16xi32>
    %18 = arith.cmpi sge, %16, %17 : vector<1x16xi32>
    %c14_i32 = arith.constant 14 : i32
    %19 = vector.broadcast %c14_i32 : i32 to vector<1x16xi32>
    %20 = arith.cmpi sle, %16, %19 : vector<1x16xi32>
    %c0 = arith.constant 0 : index
    %c0_4 = arith.constant 0 : index
    %21 = vector.load %arg2[%c0, %c0_4] : memref<4x12xf32, #tpu.memory_space<vmem>>, vector<4x12xf32>
    %c0_5 = arith.constant 0 : index
    %c0_6 = arith.constant 0 : index
    %22 = vector.load %arg3[%c0_5, %c0_6] : memref<4x12xf32, #tpu.memory_space<vmem>>, vector<4x12xf32>
    %c0_7 = arith.constant 0 : index
    %c0_8 = arith.constant 0 : index
    %23 = vector.load %arg4[%c0_7, %c0_8] : memref<4x1xf32, #tpu.memory_space<vmem>>, vector<4x1xf32>
    %c0_9 = arith.constant 0 : index
    %c0_10 = arith.constant 0 : index
    %24 = vector.load %arg5[%c0_9, %c0_10] : memref<4x1xf32, #tpu.memory_space<vmem>>, vector<4x1xf32>
    %c0_11 = arith.constant 0 : index
    %c0_12 = arith.constant 0 : index
    %25 = vector.load %arg6[%c0_11, %c0_12] : memref<4x1xf32, #tpu.memory_space<vmem>>, vector<4x1xf32>
    %c0_13 = arith.constant 0 : index
    %c0_14 = arith.constant 0 : index
    %26 = vector.load %arg7[%c0_13, %c0_14] : memref<4x1xf32, #tpu.memory_space<vmem>>, vector<4x1xf32>
    %c0_15 = arith.constant 0 : index
    %c0_16 = arith.constant 0 : index
    %c0_17 = arith.constant 0 : index
    %27 = vector.load %arg1[%c0_15, %c0_16, %c0_17] : memref<1x4x16xf32, #tpu.memory_space<vmem>>, vector<1x4x16xf32>
    %28 = tpu.transpose %27, [1, 0, 2] : vector<1x4x16xf32> -> vector<4x1x16xf32>
    %29 = vector.shape_cast %28 : vector<4x1x16xf32> to vector<4x16xf32>
    %c1_i32_18 = arith.constant 1 : i32
    %30 = tpu.dynamic_rotate %29 by %c1_i32_18 dim 1 : vector<4x16xf32>, i32 -> vector<4x16xf32>
    %cst = arith.constant 0.000000e+00 : f32
    %31 = vector.shape_cast %18 : vector<1x16xi1> to vector<1x16xi1>
    %32 = vector.broadcast %31 : vector<1x16xi1> to vector<4x16xi1>
    %33 = vector.broadcast %cst : f32 to vector<4x16xf32>
    %34 = arith.select %32, %30, %33 : vector<4x16xi1>, vector<4x16xf32>
    %c15_i32 = arith.constant 15 : i32
    %35 = tpu.dynamic_rotate %29 by %c15_i32 dim 1 : vector<4x16xf32>, i32 -> vector<4x16xf32>
    %cst_19 = arith.constant 0.000000e+00 : f32
    %36 = vector.shape_cast %20 : vector<1x16xi1> to vector<1x16xi1>
    %37 = vector.broadcast %36 : vector<1x16xi1> to vector<4x16xi1>
    %38 = vector.broadcast %cst_19 : f32 to vector<4x16xf32>
    %39 = arith.select %37, %35, %38 : vector<4x16xi1>, vector<4x16xf32>
    %40 = tpu.concatenate %34, %29, %39 in 0 : vector<4x16xf32>, vector<4x16xf32>, vector<4x16xf32> -> vector<12x16xf32>
    %cst_20 = arith.constant dense<0.000000e+00> : vector<4x16xf32>
    %41 = tpu.matmul %21, %40, %cst_20 {dimension_numbers = #tpu.dot_dimension_numbers<[1], [0], [0], [1], [0, 0, 1, 1], [], []>} : vector<4x12xf32>, vector<12x16xf32>, vector<4x16xf32> -> vector<4x16xf32>
    %42 = vector.shape_cast %41 : vector<4x16xf32> to vector<4x1x16xf32>
    %cst_21 = arith.constant dense<0.000000e+00> : vector<4x1xf32>
    %43 = vector.multi_reduction <add>, %42, %cst_21 [2] : vector<4x1x16xf32> to vector<4x1xf32>
    %44 = arith.mulf %42, %42 : vector<4x1x16xf32>
    %cst_22 = arith.constant dense<0.000000e+00> : vector<4x1xf32>
    %45 = vector.multi_reduction <add>, %44, %cst_22 [2] : vector<4x1x16xf32> to vector<4x1xf32>
    %46 = vector.shape_cast %43 : vector<4x1xf32> to vector<4x1x1xf32>
    %cst_23 = arith.constant dense<0.000000e+00> : vector<4x1xf32>
    %47 = vector.multi_reduction <add>, %46, %cst_23 [1] : vector<4x1x1xf32> to vector<4x1xf32>
    %48 = vector.shape_cast %45 : vector<4x1xf32> to vector<4x1x1xf32>
    %cst_24 = arith.constant dense<0.000000e+00> : vector<4x1xf32>
    %49 = vector.multi_reduction <add>, %48, %cst_24 [1] : vector<4x1x1xf32> to vector<4x1xf32>
    %cst_25 = arith.constant 1.600000e+01 : f32
    %50 = vector.broadcast %cst_25 : f32 to vector<4x1xf32>
    %51 = arith.divf %47, %50 : vector<4x1xf32>
    %cst_26 = arith.constant 1.600000e+01 : f32
    %52 = vector.broadcast %cst_26 : f32 to vector<4x1xf32>
    %53 = arith.divf %49, %52 : vector<4x1xf32>
    %54 = arith.mulf %51, %51 : vector<4x1xf32>
    %55 = arith.subf %53, %54 : vector<4x1xf32>
    %cst_27 = arith.constant 0.000000e+00 : f32
    %56 = vector.broadcast %cst_27 : f32 to vector<4x1xf32>
    %57 = arith.maximumf %55, %56 : vector<4x1xf32>
    %cst_28 = arith.constant 9.99999974E-6 : f32
    %58 = vector.broadcast %cst_28 : f32 to vector<4x1xf32>
    %59 = arith.addf %57, %58 : vector<4x1xf32>
    %60 = math.rsqrt %59 : vector<4x1xf32>
    %61 = vector.shape_cast %60 : vector<4x1xf32> to vector<4x1x1xf32>
    %62 = vector.shape_cast %61 : vector<4x1x1xf32> to vector<4x1xf32>
    %63 = arith.mulf %23, %62 : vector<4x1xf32>
    %64 = vector.shape_cast %51 : vector<4x1xf32> to vector<4x1x1xf32>
    %65 = vector.shape_cast %64 : vector<4x1x1xf32> to vector<4x1xf32>
    %66 = arith.mulf %65, %63 : vector<4x1xf32>
    %67 = arith.subf %24, %66 : vector<4x1xf32>
    %68 = vector.shape_cast %63 : vector<4x1xf32> to vector<4x1x1xf32>
    %69 = vector.broadcast %68 : vector<4x1x1xf32> to vector<4x1x16xf32>
    %70 = arith.mulf %42, %69 : vector<4x1x16xf32>
    %71 = vector.shape_cast %67 : vector<4x1xf32> to vector<4x1x1xf32>
    %72 = vector.broadcast %71 : vector<4x1x1xf32> to vector<4x1x16xf32>
    %73 = arith.addf %70, %72 : vector<4x1x16xf32>
    %74 = vector.shape_cast %73 : vector<4x1x16xf32> to vector<4x16xf32>
    %cst_29 = arith.constant 0.000000e+00 : f32
    %75 = vector.broadcast %cst_29 : f32 to vector<4x16xf32>
    %76 = arith.maximumf %74, %75 : vector<4x16xf32>
    %c1_i32_30 = arith.constant 1 : i32
    %77 = tpu.dynamic_rotate %76 by %c1_i32_30 dim 1 : vector<4x16xf32>, i32 -> vector<4x16xf32>
    %cst_31 = arith.constant 0.000000e+00 : f32
    %78 = vector.shape_cast %18 : vector<1x16xi1> to vector<1x16xi1>
    %79 = vector.broadcast %78 : vector<1x16xi1> to vector<4x16xi1>
    %80 = vector.broadcast %cst_31 : f32 to vector<4x16xf32>
    %81 = arith.select %79, %77, %80 : vector<4x16xi1>, vector<4x16xf32>
    %c15_i32_32 = arith.constant 15 : i32
    %82 = tpu.dynamic_rotate %76 by %c15_i32_32 dim 1 : vector<4x16xf32>, i32 -> vector<4x16xf32>
    %cst_33 = arith.constant 0.000000e+00 : f32
    %83 = vector.shape_cast %20 : vector<1x16xi1> to vector<1x16xi1>
    %84 = vector.broadcast %83 : vector<1x16xi1> to vector<4x16xi1>
    %85 = vector.broadcast %cst_33 : f32 to vector<4x16xf32>
    %86 = arith.select %84, %82, %85 : vector<4x16xi1>, vector<4x16xf32>
    %87 = tpu.concatenate %81, %76, %86 in 0 : vector<4x16xf32>, vector<4x16xf32>, vector<4x16xf32> -> vector<12x16xf32>
    %cst_34 = arith.constant dense<0.000000e+00> : vector<4x16xf32>
    %88 = tpu.matmul %22, %87, %cst_34 {dimension_numbers = #tpu.dot_dimension_numbers<[1], [0], [0], [1], [0, 0, 1, 1], [], []>} : vector<4x12xf32>, vector<12x16xf32>, vector<4x16xf32> -> vector<4x16xf32>
    %89 = vector.shape_cast %88 : vector<4x16xf32> to vector<4x1x16xf32>
    %cst_35 = arith.constant dense<0.000000e+00> : vector<4x1xf32>
    %90 = vector.multi_reduction <add>, %89, %cst_35 [2] : vector<4x1x16xf32> to vector<4x1xf32>
    %91 = arith.mulf %89, %89 : vector<4x1x16xf32>
    %cst_36 = arith.constant dense<0.000000e+00> : vector<4x1xf32>
    %92 = vector.multi_reduction <add>, %91, %cst_36 [2] : vector<4x1x16xf32> to vector<4x1xf32>
    %93 = vector.shape_cast %90 : vector<4x1xf32> to vector<4x1x1xf32>
    %cst_37 = arith.constant dense<0.000000e+00> : vector<4x1xf32>
    %94 = vector.multi_reduction <add>, %93, %cst_37 [1] : vector<4x1x1xf32> to vector<4x1xf32>
    %95 = vector.shape_cast %92 : vector<4x1xf32> to vector<4x1x1xf32>
    %cst_38 = arith.constant dense<0.000000e+00> : vector<4x1xf32>
    %96 = vector.multi_reduction <add>, %95, %cst_38 [1] : vector<4x1x1xf32> to vector<4x1xf32>
    %cst_39 = arith.constant 1.600000e+01 : f32
    %97 = vector.broadcast %cst_39 : f32 to vector<4x1xf32>
    %98 = arith.divf %94, %97 : vector<4x1xf32>
    %cst_40 = arith.constant 1.600000e+01 : f32
    %99 = vector.broadcast %cst_40 : f32 to vector<4x1xf32>
    %100 = arith.divf %96, %99 : vector<4x1xf32>
    %101 = arith.mulf %98, %98 : vector<4x1xf32>
    %102 = arith.subf %100, %101 : vector<4x1xf32>
    %cst_41 = arith.constant 0.000000e+00 : f32
    %103 = vector.broadcast %cst_41 : f32 to vector<4x1xf32>
    %104 = arith.maximumf %102, %103 : vector<4x1xf32>
    %cst_42 = arith.constant 9.99999974E-6 : f32
    %105 = vector.broadcast %cst_42 : f32 to vector<4x1xf32>
    %106 = arith.addf %104, %105 : vector<4x1xf32>
    %107 = math.rsqrt %106 : vector<4x1xf32>
    %108 = vector.shape_cast %107 : vector<4x1xf32> to vector<4x1x1xf32>
    %109 = vector.shape_cast %108 : vector<4x1x1xf32> to vector<4x1xf32>
    %110 = arith.mulf %25, %109 : vector<4x1xf32>
    %111 = vector.shape_cast %98 : vector<4x1xf32> to vector<4x1x1xf32>
    %112 = vector.shape_cast %111 : vector<4x1x1xf32> to vector<4x1xf32>
    %113 = arith.mulf %112, %110 : vector<4x1xf32>
    %114 = arith.subf %26, %113 : vector<4x1xf32>
    %115 = vector.shape_cast %110 : vector<4x1xf32> to vector<4x1x1xf32>
    %116 = vector.broadcast %115 : vector<4x1x1xf32> to vector<4x1x16xf32>
    %117 = arith.mulf %89, %116 : vector<4x1x16xf32>
    %118 = vector.shape_cast %114 : vector<4x1xf32> to vector<4x1x1xf32>
    %119 = vector.broadcast %118 : vector<4x1x1xf32> to vector<4x1x16xf32>
    %120 = arith.addf %117, %119 : vector<4x1x16xf32>
    %121 = vector.shape_cast %120 : vector<4x1x16xf32> to vector<4x16xf32>
    %122 = arith.addf %121, %29 : vector<4x16xf32>
    %cst_43 = arith.constant 0.000000e+00 : f32
    %123 = vector.broadcast %cst_43 : f32 to vector<4x16xf32>
    %124 = arith.maximumf %122, %123 : vector<4x16xf32>
    %125 = vector.shape_cast %124 : vector<4x16xf32> to vector<4x1x16xf32>
    %126 = tpu.transpose %125, [1, 0, 2] : vector<4x1x16xf32> -> vector<1x4x16xf32>
    %c0_44 = arith.constant 0 : index
    %c0_45 = arith.constant 0 : index
    %c0_46 = arith.constant 0 : index
    %127 = vector.load %arg8[%c0_44, %c0_45, %c0_46] : memref<1x4x16xf32, #tpu.memory_space<vmem>>, vector<1x4x16xf32>
    tpu.vector_store %arg8[%c0_44, %c0_45, %c0_46], %126 {strides = array<i32>} : memref<1x4x16xf32, #tpu.memory_space<vmem>>, vector<1x4x16xf32>,
    return
  }
  func.func @transform_0(%arg0: i32) -> (i32, i32, i32) {
    %c0_i32 = arith.constant 0 : i32
    %c0_i32_0 = arith.constant 0 : i32
    %c0_i32_1 = arith.constant 0 : i32
    return %arg0, %c0_i32, %c0_i32_0 : i32, i32, i32
  }
  func.func @transform_1(%arg0: i32) -> (i32, i32) {
    %c0_i32 = arith.constant 0 : i32
    %c0_i32_0 = arith.constant 0 : i32
    %c0_i32_1 = arith.constant 0 : i32
    return %c0_i32, %c0_i32_0 : i32, i32
  }
  func.func @transform_2(%arg0: i32) -> (i32, i32) {
    %c0_i32 = arith.constant 0 : i32
    %c0_i32_0 = arith.constant 0 : i32
    %c0_i32_1 = arith.constant 0 : i32
    return %c0_i32, %c0_i32_0 : i32, i32
  }
  func.func @transform_3(%arg0: i32) -> (i32, i32) {
    %c0_i32 = arith.constant 0 : i32
    %c0_i32_0 = arith.constant 0 : i32
    %c0_i32_1 = arith.constant 0 : i32
    return %c0_i32, %c0_i32_0 : i32, i32
  }
  func.func @transform_4(%arg0: i32) -> (i32, i32) {
    %c0_i32 = arith.constant 0 : i32
    %c0_i32_0 = arith.constant 0 : i32
    %c0_i32_1 = arith.constant 0 : i32
    return %c0_i32, %c0_i32_0 : i32, i32
  }
  func.func @transform_5(%arg0: i32) -> (i32, i32) {
    %c0_i32 = arith.constant 0 : i32
    %c0_i32_0 = arith.constant 0 : i32
    %c0_i32_1 = arith.constant 0 : i32
    return %c0_i32, %c0_i32_0 : i32, i32
  }
  func.func @transform_6(%arg0: i32) -> (i32, i32) {
    %c0_i32 = arith.constant 0 : i32
    %c0_i32_0 = arith.constant 0 : i32
    %c0_i32_1 = arith.constant 0 : i32
    return %c0_i32, %c0_i32_0 : i32, i32
  }
  func.func @transform_7(%arg0: i32) -> (i32, i32, i32) {
    %c0_i32 = arith.constant 0 : i32
    %c0_i32_0 = arith.constant 0 : i32
    %c0_i32_1 = arith.constant 0 : i32
    return %arg0, %c0_i32, %c0_i32_0 : i32, i32, i32
  }
}

</mosaic_0001>

<llo_original>
// kernel: tpu_custom_call.1
$region0: #{tpu_custom_call.1}
  #allocation0 [shape = 'u32[]', space=smem, size = 0x4, offset = 0x4, fixed_abs, tag = 'smem constant byte address 0x4 - core index']
  #allocation1 [shape = 'u32[144,128]{1,0:T(1,128)}', space=vmem, size = 0x12000, scoped, tag = 'internal scratch']
  %s0 = inlined_call_operand.vmem [shape: f32[2,4,16], index: 0, kind: input, shape index: {}]
  %s1 = inlined_call_operand.vmem [shape: f32[4,12], index: 1, kind: input, shape index: {}]
  %s2 = inlined_call_operand.vmem [shape: f32[4,12], index: 2, kind: input, shape index: {}]
  %s3 = inlined_call_operand.vmem [shape: f32[4,1], index: 3, kind: input, shape index: {}]
  %s4 = inlined_call_operand.vmem [shape: f32[4,1], index: 4, kind: input, shape index: {}]
  %s5 = inlined_call_operand.vmem [shape: f32[4,1], index: 5, kind: input, shape index: {}]
  %s6 = inlined_call_operand.vmem [shape: f32[4,1], index: 6, kind: input, shape index: {}]
  %s7 = inlined_call_operand.hbm [shape: f32[2,4,16], index: 7, kind: output, shape index: {}]
  %s8 = sld [smem:[#allocation0]]
  $region61: #{tpu_custom_call.1} parent=0
    _
  %s10 = ssub.s32 1, %s8
  %s11 = scalar_select 0, %s10, %s8
  $region1: #{tpu_custom_call.1} parent=0
    #allocation2 [shape = 'u8[4096]{0}', space=vmem, size = 0x1000, scoped, tag = 'output window, operand 0']
    #allocation3 [shape = 's32[2]{0}', space=sflag, size = 0x8, scoped, tag = 'scoped memory for tpu_custom_call.1']
    %12 = vsyncpa [#allocation3], 0
    %s13 = scalar_lea.sflag [#allocation3], 1
    %14 = vsyncpa %s13, 0
    loop: start=0, step=1, limit=4
    $region2: #{tpu_custom_call.1} parent=1 // loop_pre_header
      _
    $region3: #{tpu_custom_call.1} parent=1 // loop_header
      %s16 = sphi 0, %s20
      %p17 = scmp.ge.s32.totalorder %s16, 4
      %s26 = sphi 0, %s28
      %s29 = sphi 0, %s26
      %s30 = sphi 0, %s29
      %s46 = sphi 0, %s30
      %s50 = sphi 0, %s50
      %s52 = sphi 0, %s50
      %s53 = sphi 0, %s52
      %s67 = sphi 0, %s53
      %s71 = sphi 0, %s71
      %s73 = sphi 0, %s71
      %s74 = sphi 0, %s73
      %s88 = sphi 0, %s74
      %s92 = sphi 0, %s92
      %s94 = sphi 0, %s92
      %s95 = sphi 0, %s94
      %s109 = sphi 0, %s95
      %s113 = sphi 0, %s113
      %s115 = sphi 0, %s113
      %s116 = sphi 0, %s115
      %s130 = sphi 0, %s116
      %s134 = sphi 0, %s134
      %s136 = sphi 0, %s134
      %s137 = sphi 0, %s136
      %s151 = sphi 0, %s137
      %s155 = sphi 0, %s155
      %s157 = sphi 0, %s155
      %s158 = sphi 0, %s157
      %s172 = sphi 0, %s158
      %s178 = sphi 0, %s180
      %s181 = sphi 0, %s178
      %s182 = sphi 0, %s181
      %s198 = sphi 0, %s182
    $region4: #{tpu_custom_call.1} parent=1 // loop_header_branch
      %19 = sbr.rel (%p17) target = $region8
    $region5: #{tpu_custom_call.1} parent=1 // loop_body
      %s21 = ssub.s32 %s16, 1
      %s22 = ssub.s32 %s16, 2
      %s23 = sadd.s32 %s16, 1
      %s24 = ssub.s32 %s16, %s23
      %p25 = scmp.eq.s32.totalorder %s24, 0
      %s27 = sadd.s32 %s26, 1
      %s28 = scalar_select %p25, %s26, %s27
      %p31 = pneg %p25
      %p32 = scmp.eq.s32.totalorder %s16, 1
      %p33 = por %p31, %p32
      %p34 = scmp.ne.s32.totalorder %s26, %s29
      %p35 = scmp.eq.s32.totalorder %s16, 0
      %p36 = por %p34, %p35
      %p37 = scmp.ne.s32.totalorder %s26, %s29
      %p38 = scmp.eq.s32.totalorder %s21, 1
      %p39 = por %p37, %p38
      %p40 = scmp.ne.s32.totalorder %s29, %s30
      %p41 = scmp.eq.s32.totalorder %s21, 0
      %p42 = por %p40, %p41
      %p43 = scmp.ne.s32.totalorder %s29, %s30
      %p44 = scmp.eq.s32.totalorder %s22, 1
      %p45 = por %p43, %p44
      %p47 = scmp.ne.s32.totalorder %s30, %s46
      %p48 = scmp.eq.s32.totalorder %s22, 0
      %p49 = por %p47, %p48
      %s51 = sadd.s32 %s50, 1
      %p54 = scmp.eq.s32.totalorder %s16, 1
      %p55 = scmp.ne.s32.totalorder %s50, %s52
      %p56 = scmp.eq.s32.totalorder %s16, 0
      %p57 = por %p55, %p56
      %p58 = scmp.ne.s32.totalorder %s50, %s52
      %p59 = scmp.eq.s32.totalorder %s21, 1
      %p60 = por %p58, %p59
      %p61 = scmp.ne.s32.totalorder %s52, %s53
      %p62 = scmp.eq.s32.totalorder %s21, 0
      %p63 = por %p61, %p62
      %p64 = scmp.ne.s32.totalorder %s52, %s53
      %p65 = scmp.eq.s32.totalorder %s22, 1
      %p66 = por %p64, %p65
      %p68 = scmp.ne.s32.totalorder %s53, %s67
      %p69 = scmp.eq.s32.totalorder %s22, 0
      %p70 = por %p68, %p69
      %s72 = sadd.s32 %s71, 1
      %p75 = scmp.eq.s32.totalorder %s16, 1
      %p76 = scmp.ne.s32.totalorder %s71, %s73
      %p77 = scmp.eq.s32.totalorder %s16, 0
      %p78 = por %p76, %p77
      %p79 = scmp.ne.s32.totalorder %s71, %s73
      %p80 = scmp.eq.s32.totalorder %s21, 1
      %p81 = por %p79, %p80
      %p82 = scmp.ne.s32.totalorder %s73, %s74
      %p83 = scmp.eq.s32.totalorder %s21, 0
      %p84 = por %p82, %p83
      %p85 = scmp.ne.s32.totalorder %s73, %s74
      %p86 = scmp.eq.s32.totalorder %s22, 1
      %p87 = por %p85, %p86
      %p89 = scmp.ne.s32.totalorder %s74, %s88
      %p90 = scmp.eq.s32.totalorder %s22, 0
      %p91 = por %p89, %p90
      %s93 = sadd.s32 %s92, 1
      %p96 = scmp.eq.s32.totalorder %s16, 1
      %p97 = scmp.ne.s32.totalorder %s92, %s94
      %p98 = scmp.eq.s32.totalorder %s16, 0
      %p99 = por %p97, %p98
      %p100 = scmp.ne.s32.totalorder %s92, %s94
      %p101 = scmp.eq.s32.totalorder %s21, 1
      %p102 = por %p100, %p101
      %p103 = scmp.ne.s32.totalorder %s94, %s95
      %p104 = scmp.eq.s32.totalorder %s21, 0
      %p105 = por %p103, %p104
      %p106 = scmp.ne.s32.totalorder %s94, %s95
      %p107 = scmp.eq.s32.totalorder %s22, 1
      %p108 = por %p106, %p107
      %p110 = scmp.ne.s32.totalorder %s95, %s109
      %p111 = scmp.eq.s32.totalorder %s22, 0
      %p112 = por %p110, %p111
      %s114 = sadd.s32 %s113, 1
      %p117 = scmp.eq.s32.totalorder %s16, 1
      %p118 = scmp.ne.s32.totalorder %s113, %s115
      %p119 = scmp.eq.s32.totalorder %s16, 0
      %p120 = por %p118, %p119
      %p121 = scmp.ne.s32.totalorder %s113, %s115
      %p122 = scmp.eq.s32.totalorder %s21, 1
      %p123 = por %p121, %p122
      %p124 = scmp.ne.s32.totalorder %s115, %s116
      %p125 = scmp.eq.s32.totalorder %s21, 0
      %p126 = por %p124, %p125
      %p127 = scmp.ne.s32.totalorder %s115, %s116
      %p128 = scmp.eq.s32.totalorder %s22, 1
      %p129 = por %p127, %p128
      %p131 = scmp.ne.s32.totalorder %s116, %s130
      %p132 = scmp.eq.s32.totalorder %s22, 0
      %p133 = por %p131, %p132
      %s135 = sadd.s32 %s134, 1
      %p138 = scmp.eq.s32.totalorder %s16, 1
      %p139 = scmp.ne.s32.totalorder %s134, %s136
      %p140 = scmp.eq.s32.totalorder %s16, 0
      %p141 = por %p139, %p140
      %p142 = scmp.ne.s32.totalorder %s134, %s136
      %p143 = scmp.eq.s32.totalorder %s21, 1
      %p144 = por %p142, %p143
      %p145 = scmp.ne.s32.totalorder %s136, %s137
      %p146 = scmp.eq.s32.totalorder %s21, 0
      %p147 = por %p145, %p146
      %p148 = scmp.ne.s32.totalorder %s136, %s137
      %p149 = scmp.eq.s32.totalorder %s22, 1
      %p150 = por %p148, %p149
      %p152 = scmp.ne.s32.totalorder %s137, %s151
      %p153 = scmp.eq.s32.totalorder %s22, 0
      %p154 = por %p152, %p153
      %s156 = sadd.s32 %s155, 1
      %p159 = scmp.eq.s32.totalorder %s16, 1
      %p160 = scmp.ne.s32.totalorder %s155, %s157
      %p161 = scmp.eq.s32.totalorder %s16, 0
      %p162 = por %p160, %p161
      %p163 = scmp.ne.s32.totalorder %s155, %s157
      %p164 = scmp.eq.s32.totalorder %s21, 1
      %p165 = por %p163, %p164
      %p166 = scmp.ne.s32.totalorder %s157, %s158
      %p167 = scmp.eq.s32.totalorder %s21, 0
      %p168 = por %p166, %p167
      %p169 = scmp.ne.s32.totalorder %s157, %s158
      %p170 = scmp.eq.s32.totalorder %s22, 1
      %p171 = por %p169, %p170
      %p173 = scmp.ne.s32.totalorder %s158, %s172
      %p174 = scmp.eq.s32.totalorder %s22, 0
      %p175 = por %p173, %p174
      %s176 = ssub.s32 %s16, %s23
      %p177 = scmp.eq.s32.totalorder %s176, 0
      %s179 = sadd.s32 %s178, 1
      %s180 = scalar_select %p177, %s178, %s179
      %p183 = pneg %p177
      %p184 = scmp.eq.s32.totalorder %s16, 1
      %p185 = por %p183, %p184
      %p186 = scmp.ne.s32.totalorder %s178, %s181
      %p187 = scmp.eq.s32.totalorder %s16, 0
      %p188 = por %p186, %p187
      %p189 = scmp.ne.s32.totalorder %s178, %s181
      %p190 = scmp.eq.s32.totalorder %s21, 1
      %p191 = por %p189, %p190
      %p192 = scmp.ne.s32.totalorder %s181, %s182
      %p193 = scmp.eq.s32.totalorder %s21, 0
      %p194 = por %p192, %p193
      %p195 = scmp.ne.s32.totalorder %s181, %s182
      %p196 = scmp.eq.s32.totalorder %s22, 1
      %p197 = por %p195, %p196
      %p199 = scmp.ne.s32.totalorder %s182, %s198
      %p200 = scmp.eq.s32.totalorder %s22, 0
      %p201 = por %p199, %p200
      %p202 = scmp.le.s32.totalorder 1, %s16
      %p203 = scmp.lt.s32.totalorder %s16, 3
      %p204 = pnand %p202, %p203
      %p205 = pneg %p204
      // Predicated region
      $region9: #{tpu_custom_call.1} parent=5 // pred_check
        _
      $region10: #{tpu_custom_call.1} parent=5 // pred_check_branch
        %207 = sbr.rel (%p204) target = $region12
      $region11: #{tpu_custom_call.1} parent=5 // pred_region
        %s208 = ssub.s32 %s16, 1
        // Predicated region
        $region13: #{tpu_custom_call.1} parent=11 // pred_check
          %p209 = pneg %p63
        $region14: #{tpu_custom_call.1} parent=11 // pred_check_branch
          %211 = sbr.rel (%p209) target = $region16
        $region15: #{tpu_custom_call.1} parent=11 // pred_region
          _
        $region16: #{tpu_custom_call.1} parent=11 // pred_fallthru
          _
        // Predicated region
        $region17: #{tpu_custom_call.1} parent=11 // pred_check
          %p212 = pneg %p84
        $region18: #{tpu_custom_call.1} parent=11 // pred_check_branch
          %214 = sbr.rel (%p212) target = $region20
        $region19: #{tpu_custom_call.1} parent=11 // pred_region
          _
        $region20: #{tpu_custom_call.1} parent=11 // pred_fallthru
          _
        // Predicated region
        $region21: #{tpu_custom_call.1} parent=11 // pred_check
          %p215 = pneg %p105
        $region22: #{tpu_custom_call.1} parent=11 // pred_check_branch
          %217 = sbr.rel (%p215) target = $region24
        $region23: #{tpu_custom_call.1} parent=11 // pred_region
          _
        $region24: #{tpu_custom_call.1} parent=11 // pred_fallthru
          _
        // Predicated region
        $region25: #{tpu_custom_call.1} parent=11 // pred_check
          %p218 = pneg %p126
        $region26: #{tpu_custom_call.1} parent=11 // pred_check_branch
          %220 = sbr.rel (%p218) target = $region28
        $region27: #{tpu_custom_call.1} parent=11 // pred_region
          _
        $region28: #{tpu_custom_call.1} parent=11 // pred_fallthru
          _
        // Predicated region
        $region29: #{tpu_custom_call.1} parent=11 // pred_check
          %p221 = pneg %p147
        $region30: #{tpu_custom_call.1} parent=11 // pred_check_branch
          %223 = sbr.rel (%p221) target = $region32
        $region31: #{tpu_custom_call.1} parent=11 // pred_region
          _
        $region32: #{tpu_custom_call.1} parent=11 // pred_fallthru
          _
        // Predicated region
        $region33: #{tpu_custom_call.1} parent=11 // pred_check
          %p224 = pneg %p168
        $region34: #{tpu_custom_call.1} parent=11 // pred_check_branch
          %226 = sbr.rel (%p224) target = $region36
        $region35: #{tpu_custom_call.1} parent=11 // pred_region
          _
        $region36: #{tpu_custom_call.1} parent=11 // pred_fallthru
          _
      $region12: #{tpu_custom_call.1} parent=5 // pred_fallthru
        _
      %p227 = scmp.lt.s32.totalorder %s16, 2
      // Predicated region
      $region37: #{tpu_custom_call.1} parent=5 // pred_check
        %p228 = pneg %p227
      $region38: #{tpu_custom_call.1} parent=5 // pred_check_branch
        %230 = sbr.rel (%p228) target = $region40
      $region39: #{tpu_custom_call.1} parent=5 // pred_region
        // Predicated region
        $region41: #{tpu_custom_call.1} parent=39 // pred_check
          %p231 = pneg %p36
        $region42: #{tpu_custom_call.1} parent=39 // pred_check_branch
          %233 = sbr.rel (%p231) target = $region44
        $region43: #{tpu_custom_call.1} parent=39 // pred_region
          %p234 = scmp.lt.s32.totalorder %s16, 1
          %s235 = scalar_select %p234, %s16, 1
          %s236 = smul.addr %s235, 4
          %s237 = scalar_lea.vmem %s0, %s236
        $region44: #{tpu_custom_call.1} parent=39 // pred_fallthru
          _
      $region40: #{tpu_custom_call.1} parent=5 // pred_fallthru
        _
      %p238 = scmp.le.s32.totalorder 1, %s16
      %p239 = scmp.lt.s32.totalorder %s16, 3
      %p240 = pnand %p238, %p239
      %p241 = pneg %p240
      // Predicated region
      $region45: #{tpu_custom_call.1} parent=5 // pred_check
        _
      $region46: #{tpu_custom_call.1} parent=5 // pred_check_branch
        %243 = sbr.rel (%p240) target = $region48
      $region47: #{tpu_custom_call.1} parent=5 // pred_region
        %s244 = ssub.s32 %s16, 1
        %p245 = scmp.lt.s32.totalorder %s21, 1
        %s246 = scalar_select %p245, %s21, 1
        %s247 = smul.addr %s246, 4
        %s248 = scalar_lea.vmem %s0, %s247
        %p249 = pneg %p42
        %p250 = pneg %p39
        %p251 = pneg %p63
        %p252 = pneg %p60
        %p253 = pneg %p84
        %p254 = pneg %p81
        %p255 = pneg %p105
        %p256 = pneg %p102
        %p257 = pneg %p126
        %p258 = pneg %p123
        %p259 = pneg %p147
        %p260 = pneg %p144
        %p261 = pneg %p168
        %p262 = pneg %p165
        %p263 = pneg %p194
        %p264 = pneg %p191
        %s265 = sand.u32 %s181, 1
        %s266 = scalar_lea.sflag [#allocation3], %s265
        %s267 = sand.u32 %s181, 1
        %s268 = smul.addr %s267, 4
        %s269 = scalar_lea.vmem [#allocation2], %s268
        %p270 = scmp.lt.s32.totalorder %s21, 1
        %s271 = scalar_select %p270, %s21, 1
        %s272 = smul.addr %s271, 4
        %s273 = scalar_lea.vmem %s0, %s272
        %v274 = vlaneseq
        %v275 = vand.u32 %v274, 127
        %vm276 = vcmp.lt.s32.totalorder %v275, 0
        %v277 = vsub.s32 0, %v275
        %v278 = vsel %vm276, %v277, %v275
        %v279 = vshrl.u32 %v278, 4
        %v280 = vand.u32 %v278, 15
        %v281 = vsub.s32 0, %v280
        %v282 = vsel %vm276, %v281, %v280
        %vm283 = vcmp.ne.s32.totalorder %v282, 0
        %vm284 = vcmp.lt.s32.totalorder %v282, 0
        %vm285 = vmand %vm284, %vm283
        %v286 = vadd.s32 %v282, 16
        %v287 = vsel %vm285, %v286, %v282
        %vm288 = vcmp.ge.s32.totalorder %v287, 1
        %vm289 = vcmp.le.s32.totalorder %v287, 14
        %v290 = vld [vmem:[%s1] sm:$0xf]
        %v291 = vld [vmem:[%s2] sm:$0xf]
        %v292 = vld [vmem:[%s3] sm:$0xf]
        %v293 = vld [vmem:[%s4] sm:$0xf]
        %v294 = vld [vmem:[%s5] sm:$0xf]
        %v295 = vld [vmem:[%s6] sm:$0xf]
        %v296 = vld [vmem:[%s273] sm:$0xf]
        %v298 = vunpack.c.l.s4 1983009808
        %v299 = vunpack.c.0.s8 %v298
        %v300 = vlaneseq
        %v301 = vshrl.u32 %v300, 7
        %v302 = vsub.s32 %v299, %v301
        %v303 = vrot.slane %v296, %v302
        %v304 = vcombine.high %v303, 0.0
        %v306 = vunpack.c.l.s4 1934713408
        %v307 = vunpack.c.0.s8 %v306
        %v308 = vlaneseq
        %v309 = vshrl.u32 %v308, 7
        %v310 = vsub.s32 %v307, %v309
        %v311 = vrot.slane %v303, %v310
        %v313 = vunpack.c.l.s4 1934713408
        %v314 = vunpack.c.0.s8 %v313
        %v315 = vlaneseq
        %v316 = vshrl.u32 %v315, 7
        %v317 = vsub.s32 %v314, %v316
        %v318 = vrot.slane %v304, %v317
        %v319 = vcombine.high %v311, 0.0
        %v320 = vcombine.high %v318, 0.0
        %v325 = vrot.slane %v319, 7
        %vm326 = vcmask 1041409
        %v327 = vsel %vm326, %v325, %v311
        %v328 = vrot.slane %v318, 6
        %vm329 = vcmask 1042434
        %v330 = vsel %vm329, %v328, %v327
        %v331 = vrot.slane %v320, 5
        %vm332 = vcmask 1043459
        %v333 = vsel %vm332, %v331, %v330
        %vm335 = vcmask 1047680
        %336 = vrot.lane.b32.xlu0 %v333, 16
        %v337 = vpop.permute.xlu0 %336
        %v338 = vsel %vm335, %v337, %v333
        %339 = vrot.lane.b32.xlu0 %v338, 16
        %v340 = vpop.permute.xlu0 %339
        %v341 = vsel %vm335, %v340, %v333
        %v342 = vsel %vm288, 1, 0
        %vm343 = vcmp.eq.s32.totalorder %v342, 1
        %345 = vrot.lane.b32.xlu0 %v341, 113
        %v346 = vpop.permute.xlu0 %345
        %v348 = vsel %vm343, %v346, 0.0
        %v349 = vsel %vm289, 1, 0
        %vm350 = vcmp.eq.s32.totalorder %v349, 1
        %351 = vrot.lane.b32.xlu0 %v341, 127
        %v352 = vpop.permute.xlu0 %351
        %v354 = vsel %vm350, %v352, 0.0
        %v355 = vrot.slane %v311, 4
        %v356 = vrot.slane %v319, 3
        %vm357 = vcmask 1045509
        %v358 = vsel %vm357, %v356, %v355
        %v359 = vrot.slane %v318, 2
        %vm360 = vcmask 1046534
        %v361 = vsel %vm360, %v359, %v358
        %v362 = vrot.slane %v320, 1
        %vm363 = vcmask 1047559
        %v364 = vsel %vm363, %v362, %v361
        %vm366 = vcmask 1043456
        %v367 = vsel %vm366, %v348, %v364
        %vm368 = vcmask 97280
        %v370 = vsel %vm368, %v290, 0
        %v373 = vsel %vm366, %v354, 0
        %375 = vmatprep.subr.mxu0 0.0
        %376 = vmatpush1.msra.mxu0 %v367
        %377 = vmatprep.subr.mxu0 0.0
        %378 = vmatpush1.msra.mxu0 %v373
        %379 = vmatprep.subr.mxu0 0.0
        %380 = vmatpush1.msra.mxu0 0.0
        %381 = vmatprep.subr.mxu0 0.0
        %382 = vmatpush1.msra.mxu0 0.0
        %383 = vmatprep.subr.mxu0 0.0
        %384 = vmatpush1.msra.mxu0 0.0
        %385 = vmatprep.subr.mxu0 0.0
        %386 = vmatpush1.msra.mxu0 0.0
        %387 = vmatprep.subr.mxu0 0.0
        %388 = vmatpush1.msra.mxu0 0.0
        %389 = vmatprep.subr.mxu0 0.0
        %390 = vmatpush1.msra.mxu0 0.0
        %391 = vmatprep.subr.mxu0 0.0
        %392 = vmatpush1.msra.mxu0 0.0
        %393 = vmatprep.subr.mxu0 0.0
        %394 = vmatpush1.msra.mxu0 0.0
        %395 = vmatprep.subr.mxu0 0.0
        %396 = vmatpush1.msra.mxu0 0.0
        %397 = vmatprep.subr.mxu0 0.0
        %398 = vmatpush1.msra.mxu0 0.0
        %399 = vmatprep.subr.mxu0 0.0
        %400 = vmatpush1.msra.mxu0 0.0
        %401 = vmatprep.subr.mxu0 0.0
        %402 = vmatpush1.msra.mxu0 0.0
        %403 = vmatprep.subr.mxu0 0.0
        %404 = vmatpush1.msra.mxu0 0.0
        %405 = vmatprep.subr.mxu0 0.0
        %406 = vmatpush1.msra.mxu0 0.0
        %407 = vmatprep.subr.mxu0 0.0
        %408 = vmatpush1.msra.mxu0 0.0
        %409 = vmatprep.subr.mxu0 0.0
        %410 = vmatpush1.msra.mxu0 0.0
        %411 = vmatprep.subr.mxu0 0.0
        %412 = vmatpush1.msra.mxu0 0.0
        %413 = vmatprep.subr.mxu0 0.0
        %414 = vmatpush1.msra.mxu0 0.0
        %415 = vmatprep.subr.mxu0 0.0
        %416 = vmatpush1.msra.mxu0 0.0
        %417 = vmatprep.subr.mxu0 0.0
        %418 = vmatpush1.msra.mxu0 0.0
        %419 = vmatprep.subr.mxu0 0.0
        %420 = vmatpush1.msra.mxu0 0.0
        %421 = vmatprep.subr.mxu0 0.0
        %422 = vmatpush1.msra.mxu0 0.0
        %423 = vmatprep.subr.mxu0 0.0
        %424 = vmatpush1.msra.mxu0 0.0
        %425 = vmatprep.subr.mxu0 0.0
        %426 = vmatpush1.msra.mxu0 0.0
        %427 = vmatprep.subr.mxu0 0.0
        %428 = vmatpush1.msra.mxu0 0.0
        %429 = vmatprep.subr.mxu0 0.0
        %430 = vmatpush1.msra.mxu0 0.0
        %431 = vmatprep.subr.mxu0 0.0
        %432 = vmatpush1.msra.mxu0 0.0
        %433 = vmatprep.subr.mxu0 0.0
        %434 = vmatpush1.msra.mxu0 0.0
        %435 = vmatprep.subr.mxu0 0.0
        %436 = vmatpush1.msra.mxu0 0.0
        %437 = vmatprep.subr.mxu0 0.0
        %438 = vmatpush1.msra.mxu0 0.0
        %439 = vmatprep.mubr.f32.mxu0 0.0
        %440 = vmatmul.mubr.f32.gmra.mrb[0].mxu0 %v370
        %v441 = vpop.f32.mrb[0].mxu0
        %v442 = vadd.f32 0.0, %v441
        %v443 = vpop.f32.mrb[0].mxu0
        %444 = vdwg.mxu0
        %v447 = vunpack.c.l.s4 1966171168
        %v448 = vunpack.c.0.s8 %v447
        %v449 = vlaneseq
        %v450 = vshrl.u32 %v449, 7
        %v451 = vsub.s32 %v448, %v450
        %v452 = vrot.slane %v442, %v451
        %v453 = vcombine.high %v452, %v452
        %v455 = vunpack.c.l.s4 1966171168
        %v456 = vunpack.c.0.s8 %v455
        %v457 = vlaneseq
        %v458 = vshrl.u32 %v457, 7
        %v459 = vsub.s32 %v456, %v458
        %v460 = vrot.slane %v452, %v459
        %v462 = vunpack.c.l.s4 1966171168
        %v463 = vunpack.c.0.s8 %v462
        %v464 = vlaneseq
        %v465 = vshrl.u32 %v464, 7
        %v466 = vsub.s32 %v463, %v465
        %v467 = vrot.slane %v453, %v466
        %v468 = vcombine.high %v460, %v460
        %v469 = vcombine.high %v467, %v467
        %vm474 = vcmask 122880
        %v475 = vsel %vm474, %v460, 0.0
        %476 = vadd.xlane.f32.xlu0 %v475
        %v477 = vpop.xlane.xlu0 %476
        %v478 = vsel %vm474, %v467, 0.0
        %479 = vadd.xlane.f32.xlu0 %v478
        %v480 = vpop.xlane.xlu0 %479
        %v481 = vsel %vm474, %v468, 0.0
        %482 = vadd.xlane.f32.xlu0 %v481
        %v483 = vpop.xlane.xlu0 %482
        %v484 = vsel %vm474, %v469, 0.0
        %485 = vadd.xlane.f32.xlu0 %v484
        %v486 = vpop.xlane.xlu0 %485
        %v487 = vmul.f32 %v460, %v460
        %v488 = vmul.f32 %v467, %v467
        %v489 = vmul.f32 %v468, %v468
        %v490 = vmul.f32 %v469, %v469
        %v491 = vsel %vm474, %v487, 0.0
        %492 = vadd.xlane.f32.xlu0 %v491
        %v493 = vpop.xlane.xlu0 %492
        %v494 = vsel %vm474, %v488, 0.0
        %495 = vadd.xlane.f32.xlu0 %v494
        %v496 = vpop.xlane.xlu0 %495
        %v497 = vsel %vm474, %v489, 0.0
        %498 = vadd.xlane.f32.xlu0 %v497
        %v499 = vpop.xlane.xlu0 %498
        %v500 = vsel %vm474, %v490, 0.0
        %501 = vadd.xlane.f32.xlu0 %v500
        %v502 = vpop.xlane.xlu0 %501
        %v503 = vadd.f32 %v477, 0.0
        %v504 = vadd.f32 %v480, 0.0
        %v505 = vadd.f32 %v483, 0.0
        %v506 = vadd.f32 %v486, 0.0
        %v507 = vadd.f32 %v493, 0.0
        %v508 = vadd.f32 %v496, 0.0
        %v509 = vadd.f32 %v499, 0.0
        %v510 = vadd.f32 %v502, 0.0
        %v511 = vrcp.pop 16.0
        %v512 = vmul.f32 %v503, %v511
        %v513 = vmul.f32 %v504, %v511
        %v514 = vmul.f32 %v505, %v511
        %v515 = vmul.f32 %v506, %v511
        %v516 = vmul.f32 %v507, %v511
        %v517 = vmul.f32 %v508, %v511
        %v518 = vmul.f32 %v509, %v511
        %v519 = vmul.f32 %v510, %v511
        %v520 = vmul.f32 %v512, %v512
        %v521 = vmul.f32 %v513, %v513
        %v522 = vmul.f32 %v514, %v514
        %v523 = vmul.f32 %v515, %v515
        %v524 = vsub.f32 %v516, %v520
        %v525 = vsub.f32 %v517, %v521
        %v526 = vsub.f32 %v518, %v522
        %v527 = vsub.f32 %v519, %v523
        %v528 = vmax.f32 %v524, 0.0
        %v529 = vmax.f32 %v525, 0.0
        %v530 = vmax.f32 %v526, 0.0
        %v531 = vmax.f32 %v527, 0.0
        %v532 = vadd.f32 %v528, 1e-05
        %v533 = vadd.f32 %v529, 1e-05
        %v534 = vadd.f32 %v530, 1e-05
        %v535 = vadd.f32 %v531, 1e-05
        %v536 = vrsqrt.pop %v532
        %v537 = vrsqrt.pop %v533
        %v538 = vrsqrt.pop %v534
        %v539 = vrsqrt.pop %v535
        %v544 = vrot.slane %v537, 7
        %v545 = vsel %vm326, %v544, %v536
        %v546 = vrot.slane %v538, 6
        %v547 = vsel %vm329, %v546, %v545
        %v548 = vrot.slane %v539, 5
        %v549 = vsel %vm332, %v548, %v547
        %v551 = vmul.f32 %v292, %v549
        %v553 = vlaneseq
        %v554 = vshrl.u32 %v553, 7
        %v555 = vsub.s32 0, %v554
        %v556 = vrot.slane %v551, %v555
        %558 = vbcast.lane.b32.xlu0 %v556, 256
        %v559 = vpop.permute.xlu0 %558
        %v560 = vlaneseq
        %v561 = vshrl.u32 %v560, 7
        %v562 = vsub.s32 1, %v561
        %v563 = vrot.slane %v551, %v562
        %565 = vbcast.lane.b32.xlu0 %v563, 256
        %v566 = vpop.permute.xlu0 %565
        %v567 = vlaneseq
        %v568 = vshrl.u32 %v567, 7
        %v569 = vsub.s32 2, %v568
        %v570 = vrot.slane %v551, %v569
        %572 = vbcast.lane.b32.xlu0 %v570, 256
        %v573 = vpop.permute.xlu0 %572
        %v574 = vlaneseq
        %v575 = vshrl.u32 %v574, 7
        %v576 = vsub.s32 3, %v575
        %v577 = vrot.slane %v551, %v576
        %579 = vbcast.lane.b32.xlu0 %v577, 256
        %v580 = vpop.permute.xlu0 %579
        %v585 = vmul.f32 %v512, %v559
        %v586 = vmul.f32 %v513, %v566
        %v587 = vmul.f32 %v514, %v573
        %v588 = vmul.f32 %v515, %v580
        %v593 = vrot.slane %v586, 7
        %v594 = vsel %vm326, %v593, %v585
        %v595 = vrot.slane %v587, 6
        %v596 = vsel %vm329, %v595, %v594
        %v597 = vrot.slane %v588, 5
        %v598 = vsel %vm332, %v597, %v596
        %v600 = vsub.f32 %v293, %v598
        %v602 = vunpack.c.l.s4 1966171168
        %v603 = vunpack.c.0.s8 %v602
        %v604 = vlaneseq
        %v605 = vshrl.u32 %v604, 7
        %v606 = vsub.s32 %v603, %v605
        %v607 = vrot.slane %v551, %v606
        %v608 = vcombine.high %v607, %v607
        %v610 = vunpack.c.l.s4 1966171168
        %v611 = vunpack.c.0.s8 %v610
        %v612 = vlaneseq
        %v613 = vshrl.u32 %v612, 7
        %v614 = vsub.s32 %v611, %v613
        %v615 = vrot.slane %v607, %v614
        %v617 = vunpack.c.l.s4 1966171168
        %v618 = vunpack.c.0.s8 %v617
        %v619 = vlaneseq
        %v620 = vshrl.u32 %v619, 7
        %v621 = vsub.s32 %v618, %v620
        %v622 = vrot.slane %v608, %v621
        %v623 = vcombine.high %v615, %v615
        %v624 = vcombine.high %v622, %v622
        %625 = vset.pattern.permute.xlu0 0
        %626 = vperm.xlu0 %625, %v615
        %v627 = vpop.permute.xlu0 %626
        %v629 = vlaneseq
        %v630 = vshrl.u32 %v629, 7
        %v631 = vsub.s32 0, %v630
        %v632 = vrot.slane %v627, %v631
        %633 = vset.pattern.permute.xlu0 0
        %634 = vperm.xlu0 %633, %v622
        %v635 = vpop.permute.xlu0 %634
        %v637 = vlaneseq
        %v638 = vshrl.u32 %v637, 7
        %v639 = vsub.s32 0, %v638
        %v640 = vrot.slane %v635, %v639
        %641 = vset.pattern.permute.xlu0 0
        %642 = vperm.xlu0 %641, %v623
        %v643 = vpop.permute.xlu0 %642
        %v645 = vlaneseq
        %v646 = vshrl.u32 %v645, 7
        %v647 = vsub.s32 0, %v646
        %v648 = vrot.slane %v643, %v647
        %649 = vset.pattern.permute.xlu0 0
        %650 = vperm.xlu0 %649, %v624
        %v651 = vpop.permute.xlu0 %650
        %v653 = vlaneseq
        %v654 = vshrl.u32 %v653, 7
        %v655 = vsub.s32 0, %v654
        %v656 = vrot.slane %v651, %v655
        %v657 = vmul.f32 %v460, %v632
        %v658 = vmul.f32 %v467, %v640
        %v659 = vmul.f32 %v468, %v648
        %v660 = vmul.f32 %v469, %v656
        %v663 = vunpack.c.l.s4 1966171168
        %v664 = vunpack.c.0.s8 %v663
        %v665 = vlaneseq
        %v666 = vshrl.u32 %v665, 7
        %v667 = vsub.s32 %v664, %v666
        %v668 = vrot.slane %v600, %v667
        %v669 = vcombine.high %v668, %v668
        %v671 = vunpack.c.l.s4 1966171168
        %v672 = vunpack.c.0.s8 %v671
        %v673 = vlaneseq
        %v674 = vshrl.u32 %v673, 7
        %v675 = vsub.s32 %v672, %v674
        %v676 = vrot.slane %v668, %v675
        %v678 = vunpack.c.l.s4 1966171168
        %v679 = vunpack.c.0.s8 %v678
        %v680 = vlaneseq
        %v681 = vshrl.u32 %v680, 7
        %v682 = vsub.s32 %v679, %v681
        %v683 = vrot.slane %v669, %v682
        %v684 = vcombine.high %v676, %v676
        %v685 = vcombine.high %v683, %v683
        %686 = vset.pattern.permute.xlu0 0
        %687 = vperm.xlu0 %686, %v676
        %v688 = vpop.permute.xlu0 %687
        %v690 = vlaneseq
        %v691 = vshrl.u32 %v690, 7
        %v692 = vsub.s32 0, %v691
        %v693 = vrot.slane %v688, %v692
        %694 = vset.pattern.permute.xlu0 0
        %695 = vperm.xlu0 %694, %v683
        %v696 = vpop.permute.xlu0 %695
        %v698 = vlaneseq
        %v699 = vshrl.u32 %v698, 7
        %v700 = vsub.s32 0, %v699
        %v701 = vrot.slane %v696, %v700
        %702 = vset.pattern.permute.xlu0 0
        %703 = vperm.xlu0 %702, %v684
        %v704 = vpop.permute.xlu0 %703
        %v706 = vlaneseq
        %v707 = vshrl.u32 %v706, 7
        %v708 = vsub.s32 0, %v707
        %v709 = vrot.slane %v704, %v708
        %710 = vset.pattern.permute.xlu0 0
        %711 = vperm.xlu0 %710, %v685
        %v712 = vpop.permute.xlu0 %711
        %v714 = vlaneseq
        %v715 = vshrl.u32 %v714, 7
        %v716 = vsub.s32 0, %v715
        %v717 = vrot.slane %v712, %v716
        %v718 = vadd.f32 %v657, %v693
        %v719 = vadd.f32 %v658, %v701
        %v720 = vadd.f32 %v659, %v709
        %v721 = vadd.f32 %v660, %v717
        %v722 = vmax.f32 %v718, 0.0
        %v723 = vmax.f32 %v719, 0.0
        %v724 = vmax.f32 %v720, 0.0
        %v725 = vmax.f32 %v721, 0.0
        %v730 = vcombine.low %v722, %v723
        %v731 = vcombine.low %v724, %v725
        %v733 = vunpack.c.l.s4 1966171168
        %v734 = vunpack.c.0.s8 %v733
        %v735 = vlaneseq
        %v736 = vshrl.u32 %v735, 7
        %v737 = vsub.s32 %v734, %v736
        %v738 = vrot.slane %v730, %v737
        %v740 = vunpack.c.l.s4 1966171168
        %v741 = vunpack.c.0.s8 %v740
        %v742 = vlaneseq
        %v743 = vshrl.u32 %v742, 7
        %v744 = vsub.s32 %v741, %v743
        %v745 = vrot.slane %v731, %v744
        %v746 = vcombine.low %v738, %v745
        %v748 = vunpack.c.l.s4 1966171168
        %v749 = vunpack.c.0.s8 %v748
        %v750 = vlaneseq
        %v751 = vshrl.u32 %v750, 7
        %v752 = vsub.s32 %v749, %v751
        %v753 = vrot.slane %v746, %v752
        %755 = vrot.lane.b32.xlu0 %v753, 16
        %v756 = vpop.permute.xlu0 %755
        %v757 = vsel %vm335, %v756, %v753
        %758 = vrot.lane.b32.xlu0 %v757, 16
        %v759 = vpop.permute.xlu0 %758
        %v760 = vsel %vm335, %v759, %v753
        %762 = vrot.lane.b32.xlu0 %v760, 113
        %v763 = vpop.permute.xlu0 %762
        %v765 = vsel %vm343, %v763, 0.0
        %766 = vrot.lane.b32.xlu0 %v760, 127
        %v767 = vpop.permute.xlu0 %766
        %v769 = vsel %vm350, %v767, 0.0
        %v770 = vcombine.low %v753, %v753
        %v772 = vsel %vm366, %v765, %v770
        %v774 = vsel %vm368, %v291, 0
        %v777 = vsel %vm366, %v769, 0
        %779 = vmatprep.subr.mxu0 0.0
        %780 = vmatpush1.msra.mxu0 %v772
        %781 = vmatprep.subr.mxu0 0.0
        %782 = vmatpush1.msra.mxu0 %v777
        %783 = vmatprep.subr.mxu0 0.0
        %784 = vmatpush1.msra.mxu0 0.0
        %785 = vmatprep.subr.mxu0 0.0
        %786 = vmatpush1.msra.mxu0 0.0
        %787 = vmatprep.subr.mxu0 0.0
        %788 = vmatpush1.msra.mxu0 0.0
        %789 = vmatprep.subr.mxu0 0.0
        %790 = vmatpush1.msra.mxu0 0.0
        %791 = vmatprep.subr.mxu0 0.0
        %792 = vmatpush1.msra.mxu0 0.0
        %793 = vmatprep.subr.mxu0 0.0
        %794 = vmatpush1.msra.mxu0 0.0
        %795 = vmatprep.subr.mxu0 0.0
        %796 = vmatpush1.msra.mxu0 0.0
        %797 = vmatprep.subr.mxu0 0.0
        %798 = vmatpush1.msra.mxu0 0.0
        %799 = vmatprep.subr.mxu0 0.0
        %800 = vmatpush1.msra.mxu0 0.0
        %801 = vmatprep.subr.mxu0 0.0
        %802 = vmatpush1.msra.mxu0 0.0
        %803 = vmatprep.subr.mxu0 0.0
        %804 = vmatpush1.msra.mxu0 0.0
        %805 = vmatprep.subr.mxu0 0.0
        %806 = vmatpush1.msra.mxu0 0.0
        %807 = vmatprep.subr.mxu0 0.0
        %808 = vmatpush1.msra.mxu0 0.0
        %809 = vmatprep.subr.mxu0 0.0
        %810 = vmatpush1.msra.mxu0 0.0
        %811 = vmatprep.subr.mxu0 0.0
        %812 = vmatpush1.msra.mxu0 0.0
        %813 = vmatprep.subr.mxu0 0.0
        %814 = vmatpush1.msra.mxu0 0.0
        %815 = vmatprep.subr.mxu0 0.0
        %816 = vmatpush1.msra.mxu0 0.0
        %817 = vmatprep.subr.mxu0 0.0
        %818 = vmatpush1.msra.mxu0 0.0
        %819 = vmatprep.subr.mxu0 0.0
        %820 = vmatpush1.msra.mxu0 0.0
        %821 = vmatprep.subr.mxu0 0.0
        %822 = vmatpush1.msra.mxu0 0.0
        %823 = vmatprep.subr.mxu0 0.0
        %824 = vmatpush1.msra.mxu0 0.0
        %825 = vmatprep.subr.mxu0 0.0
        %826 = vmatpush1.msra.mxu0 0.0
        %827 = vmatprep.subr.mxu0 0.0
        %828 = vmatpush1.msra.mxu0 0.0
        %829 = vmatprep.subr.mxu0 0.0
        %830 = vmatpush1.msra.mxu0 0.0
        %831 = vmatprep.subr.mxu0 0.0
        %832 = vmatpush1.msra.mxu0 0.0
        %833 = vmatprep.subr.mxu0 0.0
        %834 = vmatpush1.msra.mxu0 0.0
        %835 = vmatprep.subr.mxu0 0.0
        %836 = vmatpush1.msra.mxu0 0.0
        %837 = vmatprep.subr.mxu0 0.0
        %838 = vmatpush1.msra.mxu0 0.0
        %839 = vmatprep.subr.mxu0 0.0
        %840 = vmatpush1.msra.mxu0 0.0
        %841 = vmatprep.subr.mxu0 0.0
        %842 = vmatpush1.msra.mxu0 0.0
        %843 = vmatprep.mubr.f32.mxu0 0.0
        %844 = vmatmul.mubr.f32.gmra.mrb[0].mxu0 %v774
        %v845 = vpop.f32.mrb[0].mxu0
        %v846 = vadd.f32 0.0, %v845
        %v847 = vpop.f32.mrb[0].mxu0
        %848 = vdwg.mxu0
        %v851 = vunpack.c.l.s4 1966171168
        %v852 = vunpack.c.0.s8 %v851
        %v853 = vlaneseq
        %v854 = vshrl.u32 %v853, 7
        %v855 = vsub.s32 %v852, %v854
        %v856 = vrot.slane %v846, %v855
        %v857 = vcombine.high %v856, %v856
        %v859 = vunpack.c.l.s4 1966171168
        %v860 = vunpack.c.0.s8 %v859
        %v861 = vlaneseq
        %v862 = vshrl.u32 %v861, 7
        %v863 = vsub.s32 %v860, %v862
        %v864 = vrot.slane %v856, %v863
        %v866 = vunpack.c.l.s4 1966171168
        %v867 = vunpack.c.0.s8 %v866
        %v868 = vlaneseq
        %v869 = vshrl.u32 %v868, 7
        %v870 = vsub.s32 %v867, %v869
        %v871 = vrot.slane %v857, %v870
        %v872 = vcombine.high %v864, %v864
        %v873 = vcombine.high %v871, %v871
        %v878 = vsel %vm474, %v864, 0.0
        %879 = vadd.xlane.f32.xlu0 %v878
        %v880 = vpop.xlane.xlu0 %879
        %v881 = vsel %vm474, %v871, 0.0
        %882 = vadd.xlane.f32.xlu0 %v881
        %v883 = vpop.xlane.xlu0 %882
        %v884 = vsel %vm474, %v872, 0.0
        %885 = vadd.xlane.f32.xlu0 %v884
        %v886 = vpop.xlane.xlu0 %885
        %v887 = vsel %vm474, %v873, 0.0
        %888 = vadd.xlane.f32.xlu0 %v887
        %v889 = vpop.xlane.xlu0 %888
        %v890 = vmul.f32 %v864, %v864
        %v891 = vmul.f32 %v871, %v871
        %v892 = vmul.f32 %v872, %v872
        %v893 = vmul.f32 %v873, %v873
        %v894 = vsel %vm474, %v890, 0.0
        %895 = vadd.xlane.f32.xlu0 %v894
        %v896 = vpop.xlane.xlu0 %895
        %v897 = vsel %vm474, %v891, 0.0
        %898 = vadd.xlane.f32.xlu0 %v897
        %v899 = vpop.xlane.xlu0 %898
        %v900 = vsel %vm474, %v892, 0.0
        %901 = vadd.xlane.f32.xlu0 %v900
        %v902 = vpop.xlane.xlu0 %901
        %v903 = vsel %vm474, %v893, 0.0
        %904 = vadd.xlane.f32.xlu0 %v903
        %v905 = vpop.xlane.xlu0 %904
        %v906 = vadd.f32 %v880, 0.0
        %v907 = vadd.f32 %v883, 0.0
        %v908 = vadd.f32 %v886, 0.0
        %v909 = vadd.f32 %v889, 0.0
        %v910 = vadd.f32 %v896, 0.0
        %v911 = vadd.f32 %v899, 0.0
        %v912 = vadd.f32 %v902, 0.0
        %v913 = vadd.f32 %v905, 0.0
        %v914 = vmul.f32 %v906, %v511
        %v915 = vmul.f32 %v907, %v511
        %v916 = vmul.f32 %v908, %v511
        %v917 = vmul.f32 %v909, %v511
        %v918 = vmul.f32 %v910, %v511
        %v919 = vmul.f32 %v911, %v511
        %v920 = vmul.f32 %v912, %v511
        %v921 = vmul.f32 %v913, %v511
        %v922 = vmul.f32 %v914, %v914
        %v923 = vmul.f32 %v915, %v915
        %v924 = vmul.f32 %v916, %v916
        %v925 = vmul.f32 %v917, %v917
        %v926 = vsub.f32 %v918, %v922
        %v927 = vsub.f32 %v919, %v923
        %v928 = vsub.f32 %v920, %v924
        %v929 = vsub.f32 %v921, %v925
        %v930 = vmax.f32 %v926, 0.0
        %v931 = vmax.f32 %v927, 0.0
        %v932 = vmax.f32 %v928, 0.0
        %v933 = vmax.f32 %v929, 0.0
        %v934 = vadd.f32 %v930, 1e-05
        %v935 = vadd.f32 %v931, 1e-05
        %v936 = vadd.f32 %v932, 1e-05
        %v937 = vadd.f32 %v933, 1e-05
        %v938 = vrsqrt.pop %v934
        %v939 = vrsqrt.pop %v935
        %v940 = vrsqrt.pop %v936
        %v941 = vrsqrt.pop %v937
        %v946 = vrot.slane %v939, 7
        %v947 = vsel %vm326, %v946, %v938
        %v948 = vrot.slane %v940, 6
        %v949 = vsel %vm329, %v948, %v947
        %v950 = vrot.slane %v941, 5
        %v951 = vsel %vm332, %v950, %v949
        %v953 = vmul.f32 %v294, %v951
        %v955 = vlaneseq
        %v956 = vshrl.u32 %v955, 7
        %v957 = vsub.s32 0, %v956
        %v958 = vrot.slane %v953, %v957
        %960 = vbcast.lane.b32.xlu0 %v958, 256
        %v961 = vpop.permute.xlu0 %960
        %v962 = vlaneseq
        %v963 = vshrl.u32 %v962, 7
        %v964 = vsub.s32 1, %v963
        %v965 = vrot.slane %v953, %v964
        %967 = vbcast.lane.b32.xlu0 %v965, 256
        %v968 = vpop.permute.xlu0 %967
        %v969 = vlaneseq
        %v970 = vshrl.u32 %v969, 7
        %v971 = vsub.s32 2, %v970
        %v972 = vrot.slane %v953, %v971
        %974 = vbcast.lane.b32.xlu0 %v972, 256
        %v975 = vpop.permute.xlu0 %974
        %v976 = vlaneseq
        %v977 = vshrl.u32 %v976, 7
        %v978 = vsub.s32 3, %v977
        %v979 = vrot.slane %v953, %v978
        %981 = vbcast.lane.b32.xlu0 %v979, 256
        %v982 = vpop.permute.xlu0 %981
        %v987 = vmul.f32 %v914, %v961
        %v988 = vmul.f32 %v915, %v968
        %v989 = vmul.f32 %v916, %v975
        %v990 = vmul.f32 %v917, %v982
        %v995 = vrot.slane %v988, 7
        %v996 = vsel %vm326, %v995, %v987
        %v997 = vrot.slane %v989, 6
        %v998 = vsel %vm329, %v997, %v996
        %v999 = vrot.slane %v990, 5
        %v1000 = vsel %vm332, %v999, %v998
        %v1002 = vsub.f32 %v295, %v1000
        %v1004 = vunpack.c.l.s4 1966171168
        %v1005 = vunpack.c.0.s8 %v1004
        %v1006 = vlaneseq
        %v1007 = vshrl.u32 %v1006, 7
        %v1008 = vsub.s32 %v1005, %v1007
        %v1009 = vrot.slane %v953, %v1008
        %v1010 = vcombine.high %v1009, %v1009
        %v1012 = vunpack.c.l.s4 1966171168
        %v1013 = vunpack.c.0.s8 %v1012
        %v1014 = vlaneseq
        %v1015 = vshrl.u32 %v1014, 7
        %v1016 = vsub.s32 %v1013, %v1015
        %v1017 = vrot.slane %v1009, %v1016
        %v1019 = vunpack.c.l.s4 1966171168
        %v1020 = vunpack.c.0.s8 %v1019
        %v1021 = vlaneseq
        %v1022 = vshrl.u32 %v1021, 7
        %v1023 = vsub.s32 %v1020, %v1022
        %v1024 = vrot.slane %v1010, %v1023
        %v1025 = vcombine.high %v1017, %v1017
        %v1026 = vcombine.high %v1024, %v1024
        %1027 = vset.pattern.permute.xlu0 0
        %1028 = vperm.xlu0 %1027, %v1017
        %v1029 = vpop.permute.xlu0 %1028
        %v1031 = vlaneseq
        %v1032 = vshrl.u32 %v1031, 7
        %v1033 = vsub.s32 0, %v1032
        %v1034 = vrot.slane %v1029, %v1033
        %1035 = vset.pattern.permute.xlu0 0
        %1036 = vperm.xlu0 %1035, %v1024
        %v1037 = vpop.permute.xlu0 %1036
        %v1039 = vlaneseq
        %v1040 = vshrl.u32 %v1039, 7
        %v1041 = vsub.s32 0, %v1040
        %v1042 = vrot.slane %v1037, %v1041
        %1043 = vset.pattern.permute.xlu0 0
        %1044 = vperm.xlu0 %1043, %v1025
        %v1045 = vpop.permute.xlu0 %1044
        %v1047 = vlaneseq
        %v1048 = vshrl.u32 %v1047, 7
        %v1049 = vsub.s32 0, %v1048
        %v1050 = vrot.slane %v1045, %v1049
        %1051 = vset.pattern.permute.xlu0 0
        %1052 = vperm.xlu0 %1051, %v1026
        %v1053 = vpop.permute.xlu0 %1052
        %v1055 = vlaneseq
        %v1056 = vshrl.u32 %v1055, 7
        %v1057 = vsub.s32 0, %v1056
        %v1058 = vrot.slane %v1053, %v1057
        %v1059 = vmul.f32 %v864, %v1034
        %v1060 = vmul.f32 %v871, %v1042
        %v1061 = vmul.f32 %v872, %v1050
        %v1062 = vmul.f32 %v873, %v1058
        %v1065 = vunpack.c.l.s4 1966171168
        %v1066 = vunpack.c.0.s8 %v1065
        %v1067 = vlaneseq
        %v1068 = vshrl.u32 %v1067, 7
        %v1069 = vsub.s32 %v1066, %v1068
        %v1070 = vrot.slane %v1002, %v1069
        %v1071 = vcombine.high %v1070, %v1070
        %v1073 = vunpack.c.l.s4 1966171168
        %v1074 = vunpack.c.0.s8 %v1073
        %v1075 = vlaneseq
        %v1076 = vshrl.u32 %v1075, 7
        %v1077 = vsub.s32 %v1074, %v1076
        %v1078 = vrot.slane %v1070, %v1077
        %v1080 = vunpack.c.l.s4 1966171168
        %v1081 = vunpack.c.0.s8 %v1080
        %v1082 = vlaneseq
        %v1083 = vshrl.u32 %v1082, 7
        %v1084 = vsub.s32 %v1081, %v1083
        %v1085 = vrot.slane %v1071, %v1084
        %v1086 = vcombine.high %v1078, %v1078
        %v1087 = vcombine.high %v1085, %v1085
        %1088 = vset.pattern.permute.xlu0 0
        %1089 = vperm.xlu0 %1088, %v1078
        %v1090 = vpop.permute.xlu0 %1089
        %v1092 = vlaneseq
        %v1093 = vshrl.u32 %v1092, 7
        %v1094 = vsub.s32 0, %v1093
        %v1095 = vrot.slane %v1090, %v1094
        %1096 = vset.pattern.permute.xlu0 0
        %1097 = vperm.xlu0 %1096, %v1085
        %v1098 = vpop.permute.xlu0 %1097
        %v1100 = vlaneseq
        %v1101 = vshrl.u32 %v1100, 7
        %v1102 = vsub.s32 0, %v1101
        %v1103 = vrot.slane %v1098, %v1102
        %1104 = vset.pattern.permute.xlu0 0
        %1105 = vperm.xlu0 %1104, %v1086
        %v1106 = vpop.permute.xlu0 %1105
        %v1108 = vlaneseq
        %v1109 = vshrl.u32 %v1108, 7
        %v1110 = vsub.s32 0, %v1109
        %v1111 = vrot.slane %v1106, %v1110
        %1112 = vset.pattern.permute.xlu0 0
        %1113 = vperm.xlu0 %1112, %v1087
        %v1114 = vpop.permute.xlu0 %1113
        %v1116 = vlaneseq
        %v1117 = vshrl.u32 %v1116, 7
        %v1118 = vsub.s32 0, %v1117
        %v1119 = vrot.slane %v1114, %v1118
        %v1120 = vadd.f32 %v1059, %v1095
        %v1121 = vadd.f32 %v1060, %v1103
        %v1122 = vadd.f32 %v1061, %v1111
        %v1123 = vadd.f32 %v1062, %v1119
        %v1124 = vadd.f32 %v1120, %v311
        %v1125 = vadd.f32 %v1121, %v319
        %v1126 = vadd.f32 %v1122, %v318
        %v1127 = vadd.f32 %v1123, %v320
        %v1128 = vmax.f32 %v1124, 0.0
        %v1129 = vmax.f32 %v1125, 0.0
        %v1130 = vmax.f32 %v1126, 0.0
        %v1131 = vmax.f32 %v1127, 0.0
        %v1136 = vcombine.low %v1128, %v1129
        %v1137 = vcombine.low %v1130, %v1131
        %v1139 = vunpack.c.l.s4 1966171168
        %v1140 = vunpack.c.0.s8 %v1139
        %v1141 = vlaneseq
        %v1142 = vshrl.u32 %v1141, 7
        %v1143 = vsub.s32 %v1140, %v1142
        %v1144 = vrot.slane %v1136, %v1143
        %v1146 = vunpack.c.l.s4 1966171168
        %v1147 = vunpack.c.0.s8 %v1146
        %v1148 = vlaneseq
        %v1149 = vshrl.u32 %v1148, 7
        %v1150 = vsub.s32 %v1147, %v1149
        %v1151 = vrot.slane %v1137, %v1150
        %v1152 = vcombine.low %v1144, %v1151
        %v1154 = vunpack.c.l.s4 1966171168
        %v1155 = vunpack.c.0.s8 %v1154
        %v1156 = vlaneseq
        %v1157 = vshrl.u32 %v1156, 7
        %v1158 = vsub.s32 %v1155, %v1157
        %v1159 = vrot.slane %v1152, %v1158
        %vm1161 = vcmask 125952
        %1162 = vst.msk [vmem:[%s269] sm:$0xf] %vm1161, %v1159
        %s1163 = sand.u32 %s181, 1
        %s1164 = scalar_lea.sflag [#allocation3], %s1163
        %s1165 = sand.u32 %s181, 1
        %s1166 = smul.addr %s1165, 4
        %s1167 = scalar_lea.vmem [#allocation2], %s1166
        // Predicated region
        $region49: #{tpu_custom_call.1} parent=47 // pred_check
          %p1168 = pneg %p191
        $region50: #{tpu_custom_call.1} parent=47 // pred_check_branch
          %1170 = sbr.rel (%p1168) target = $region52
        $region51: #{tpu_custom_call.1} parent=47 // pred_region
          %s1172 = ssub.s32 64, 64
          %1173 = vsyncadd %s1164, %s1172
          %s1174 = smul.addr %s21, 64
          %s1175 = scalar_lea.hbm %s7, %s1174
          %s1177 = sshll.u32 %s1167, 4
          %s1178 = int_to_ptr.vmem [resolvable:$true] %s1177
          %1180 = dma.vmem_to_hbm [thread:$0]  %s1178, 64, %s1175, %s1164
        $region52: #{tpu_custom_call.1} parent=47 // pred_fallthru
          _
      $region48: #{tpu_custom_call.1} parent=5 // pred_fallthru
        _
      %p1181 = scmp.le.s32.totalorder 2, %s16
      // Predicated region
      $region53: #{tpu_custom_call.1} parent=5 // pred_check
        %p1182 = pneg %p1181
      $region54: #{tpu_custom_call.1} parent=5 // pred_check_branch
        %1184 = sbr.rel (%p1182) target = $region56
      $region55: #{tpu_custom_call.1} parent=5 // pred_region
        %s1185 = ssub.s32 %s16, 2
        // Predicated region
        $region57: #{tpu_custom_call.1} parent=55 // pred_check
          %p1186 = pneg %p197
        $region58: #{tpu_custom_call.1} parent=55 // pred_check_branch
          %1188 = sbr.rel (%p1186) target = $region60
        $region59: #{tpu_custom_call.1} parent=55 // pred_region
          %s1189 = sand.u32 %s182, 1
          %s1190 = scalar_lea.sflag [#allocation3], %s1189
          %s1191 = sand.u32 %s182, 1
          %s1192 = smul.addr %s1191, 4
          %s1193 = scalar_lea.vmem [#allocation2], %s1192
          %1194 = dma.done %s1190, 64
        $region60: #{tpu_custom_call.1} parent=55 // pred_fallthru
          _
      $region56: #{tpu_custom_call.1} parent=5 // pred_fallthru
        _
    $region6: #{tpu_custom_call.1} parent=1 // loop_footer
      %s20 = sadd.s32 1, %s16
    $region7: #{tpu_custom_call.1} parent=1 // loop_footer_branch
      %15 = sbr.rel target = $region3
    $region8: #{tpu_custom_call.1} parent=1 // loop_exit
      _
    %1195 = vsyncpa [#allocation3], 1
    %s1196 = scalar_lea.sflag [#allocation3], 1
    %1197 = vsyncpa %s1196, 1

</llo_original>
